<compile_context>
chip_gen: v7x
topology: tpu7x:2x2x1
jax: 0.10.0
libtpu: 0.0.40
codegen_flags: <defaults>
</compile_context>

<pallas_src>
import functools

import jax
import jax.numpy as jnp
from jax.experimental import pallas as pl
from jax.experimental.pallas import tpu as pltpu

KERNEL_SET = (2, 3, 6, 7)
MAX_K = KERNEL_SET[-1]  # 7


# ----------------------------------------------------------------------------
# Kernel 1: fused dilated-inception gating + CGP channel mixing.
#   rows = (batch, node, time), one K=7*C matmul for filter|gate, one matmul
#   applying every per-state 1x1 mixing weight at once.
# ----------------------------------------------------------------------------
def gate_mix_kernel(x_ref, wfg_ref, bfg_ref, wmix_ref, u_ref, *, hidden):
    # x_ref   : (TR, 7*C)   bf16 im2col slab
    # wfg_ref : (7*C, 2*C)  bf16 [filter | gate] inception weights
    # bfg_ref : (1, 2*C)    f32  [filter | gate] biases
    # wmix_ref: (C, CU)     bf16 all CGP mixing weights, column-blocked per state
    # u_ref   : (TR, CU)    f32  pre-mixed ODE inputs (lane-dense)
    g = jnp.dot(x_ref[...], wfg_ref[...], preferred_element_type=jnp.float32)
    g = g + bfg_ref[...]
    filt = jnp.tanh(g[:, :hidden])            # keep transcendental inputs f32
    gate = jax.nn.sigmoid(g[:, hidden:])
    z = (filt * gate).astype(jnp.bfloat16)    # bf16 into the MXU, f32 accum
    u_ref[...] = jnp.dot(z, wmix_ref[...], preferred_element_type=jnp.float32)


# ----------------------------------------------------------------------------
# Kernel 2: continuous graph propagation (fixed-step Euler == Horner recursion
# on the pre-mixed states), node-major layout, kron-free A_hat application.
# ----------------------------------------------------------------------------
def cgp_kernel(u_ref, a1_ref, a2_ref, bias_ref, y_ref, *, num_steps, beta):
    # u_ref   : (1, 2S+1, N, t_out*C) f32; block 0 = shared s=0 mix,
    #           blocks 1..S -> gconv1 states, blocks S+1..2S -> gconv2 states.
    # a1/a2   : (N, N) bf16 normalized adjacency (gconv1: adj, gconv2: adj.T)
    # bias    : (1, t_out*C) f32 (bm1 + bm2 tiled over time)
    # y_ref   : (1, N, t_out*C) f32, lane-dense output
    def apply_m(a, r):
        # M r = (1-b) r + b (A_hat (x) I_t) r, applied as one (N,N)@(N,t_out*C)
        ar = jnp.dot(a, r.astype(jnp.bfloat16), preferred_element_type=jnp.float32)
        return (1.0 - beta) * r + beta * ar

    def chain(a, base):
        # Horner evaluation of sum_{s=1..S} M^s u_s  (S matmuls total)
        r = u_ref[0, base + num_steps - 1]
        for s in range(num_steps - 1, 0, -1):
            r = u_ref[0, base + s - 1] + apply_m(a, r)
        return apply_m(a, r)

    a1 = a1_ref[...]
    a2 = a2_ref[...]
    y = u_ref[0, 0] + chain(a1, 1) + chain(a2, 1 + num_steps) + bias_ref[...]
    y_ref[0] = y.astype(y_ref.dtype)


# ----------------------------------------------------------------------------
# Glue: adjacency normalization, layout plumbing, parameter packing.
# ----------------------------------------------------------------------------
def _normalize_adj(adj):
    # A_hat = D^-1/2 (A + I) D^-1/2 (depends only on adj -> hoisted to wrapper)
    n = adj.shape[0]
    a = adj.astype(jnp.float32) + jnp.eye(n, dtype=jnp.float32)
    dinv = jax.lax.rsqrt(a.sum(axis=1))
    return dinv[:, None] * a * dinv[None, :]


def _pick_row_tile(rows, max_rows=2048):
    """Largest multiple-of-8 divisor of `rows` (<= max_rows), preferring >=2 tiles."""
    cands = [d for d in range(8, rows + 1, 8) if rows % d == 0]
    if not cands:
        return rows
    multi = [d for d in cands if d <= max_rows and rows // d >= 2]
    if multi:
        return max(multi)
    under = [d for d in cands if d <= max_rows]
    return max(under) if under else min(cands)


def stblock_forward(t, x_nchw, adj, params, *, receptive_field, dilation=1,
                    time=1.0, step_size=0.5, alpha=1.0):
    del t  # unused by the PyTorch forward as well
    num_steps = round(time / step_size)
    assert num_steps >= 1
    beta = float(step_size) * 0.5 * float(alpha)

    B, C, N, _ = x_nchw.shape
    T = receptive_field
    t_out = T - dilation * (MAX_K - 1)
    tc = t_out * C
    n_blk = 2 * num_steps + 1
    cu = n_blk * C
    R = B * N * t_out
    assert R % 8 == 0

    wf, bf, wg, bg, wm1, bm1, wm2, bm2 = params

    # ---- layout plumbing + parameter packing (plain XLA, tiny tensors) ----
    x = x_nchw[..., -T:]                                        # x[..., -seq_len:]
    xl = jnp.transpose(x, (0, 2, 3, 1)).astype(jnp.float32)     # (B, N, T, C)
    # im2col: rows=(b,n,t), cols=(tap,channel) -> lane-dense K = 7*C
    slab = jnp.concatenate(
        [xl[:, :, m * dilation: m * dilation + t_out, :] for m in range(MAX_K)],
        axis=-1).reshape(R, MAX_K * C).astype(jnp.bfloat16)

    wfg = jnp.concatenate([wf.reshape(MAX_K * C, C),
                           wg.reshape(MAX_K * C, C)], axis=1).astype(jnp.bfloat16)
    bfg = jnp.concatenate([bf, bg], axis=1).astype(jnp.float32)          # (1, 2C)
    wmix = jnp.concatenate(
        [wm1[0] + wm2[0]]                                                # shared s=0
        + [wm1[s] for s in range(1, num_steps + 1)]
        + [wm2[s] for s in range(1, num_steps + 1)],
        axis=1).astype(jnp.bfloat16)                                     # (C, cu)
    bias_node = jnp.tile((bm1 + bm2).astype(jnp.float32), (1, t_out))    # (1, tc)

    a1 = _normalize_adj(adj).astype(jnp.bfloat16)                        # (N, N)
    a2 = _normalize_adj(adj.T).astype(jnp.bfloat16)

    # ---- kernel 1: gating + mixing, whole batch folded into rows ----
    TR = _pick_row_tile(R)                    # >=2 tiles when possible (megacore)
    n_row_tiles = R // TR
    u = pl.pallas_call(
        functools.partial(gate_mix_kernel, hidden=C),
        out_shape=jax.ShapeDtypeStruct((R, cu), jnp.float32),
        grid_spec=pltpu.PrefetchScalarGridSpec(
            num_scalar_prefetch=0,
            grid=(n_row_tiles,),
            in_specs=[
                pl.BlockSpec((TR, MAX_K * C), lambda i: (i, 0)),
                pl.BlockSpec((MAX_K * C, 2 * C), lambda i: (0, 0)),
                pl.BlockSpec((1, 2 * C), lambda i: (0, 0)),
                pl.BlockSpec((C, cu), lambda i: (0, 0)),
            ],
            out_specs=pl.BlockSpec((TR, cu), lambda i: (i, 0)),
        ),
        compiler_params=pltpu.CompilerParams(
            dimension_semantics=("parallel",)),
    )(slab, wfg, bfg, wmix)

    # node-major layout for graph propagation: (B, state, N, t_out*C)
    # (wrapper-side reshape/transpose = layout plumbing, ~100 KB at these shapes)
    u_node = (u.reshape(B, N, t_out, n_blk, C)
              .transpose(0, 3, 1, 2, 4)
              .reshape(B, n_blk, N, tc))

    # ---- kernel 2: CGP Horner recursion, kron-free adjacency, per-batch grid ----
    y_node = pl.pallas_call(
        functools.partial(cgp_kernel, num_steps=num_steps, beta=beta),
        out_shape=jax.ShapeDtypeStruct((B, N, tc), jnp.float32),
        grid_spec=pltpu.PrefetchScalarGridSpec(
            num_scalar_prefetch=0,
            grid=(B,),
            in_specs=[
                pl.BlockSpec((1, n_blk, N, tc), lambda b: (b, 0, 0, 0)),
                pl.BlockSpec((N, N), lambda b: (0, 0)),
                pl.BlockSpec((N, N), lambda b: (0, 0)),
                pl.BlockSpec((1, tc), lambda b: (0, 0)),
            ],
            out_specs=pl.BlockSpec((1, N, tc), lambda b: (b, 0, 0)),
        ),
        compiler_params=pltpu.CompilerParams(
            dimension_semantics=("parallel",)),
    )(u_node, a1, a2, bias_node)

    # back to NCHW with F.pad(x, (receptive_field - x.size(3), 0))
    y = y_node.reshape(B, N, t_out, C)
    y = jnp.pad(y, ((0, 0), (0, 0), (T - t_out, 0), (0, 0)))
    return jnp.transpose(y, (0, 3, 1, 2))


# ----------------------------------------------------------------------------
# Pure-JAX reference of the original (un-refactored) math, used for validation.
# Inputs are rounded through bf16 (matching the kernel's operand dtype) but all
# arithmetic is f32, so it checks the packing, the Horner/commutation refactor
# and the layout plumbing.
# ----------------------------------------------------------------------------
def stblock_reference(t, x_nchw, adj, params, *, receptive_field, dilation=1,
                      time=1.0, step_size=0.5, alpha=1.0):
    del t
    num_steps = round(time / step_size)
    beta = float(step_size) * 0.5 * float(alpha)
    B, C, N, _ = x_nchw.shape
    T = receptive_field
    t_out = T - dilation * (MAX_K - 1)

    def r(v):  # mirror the kernel's bf16 operand rounding
        return v.astype(jnp.bfloat16).astype(jnp.float32)

    wf, bf, wg, bg, wm1, bm1, wm2, bm2 = params
    x = x_nchw[..., -T:]
    xl = r(jnp.transpose(x, (0, 2, 3, 1)).astype(jnp.float32))        # (B,N,T,C)
    taps = jnp.stack([xl[:, :, m * dilation:m * dilation + t_out, :]
                      for m in range(MAX_K)], axis=3)                 # (B,N,t,7,C)
    filt = jnp.tanh(jnp.einsum('bntmc,mcd->bntd', taps, r(wf)) + bf)
    gate = jax.nn.sigmoid(jnp.einsum('bntmc,mcd->bntd', taps, r(wg)) + bg)
    z = filt * gate                                                   # (B,N,t,C)

    def cgp(a_hat, wm, bm):
        h = z
        out = jnp.einsum('bntc,cd->bntd', h, r(wm[0]))
        for s in range(1, num_steps + 1):
            ah = jnp.einsum('vw,bwtc->bvtc', a_hat, h)
            h = h + beta * (ah - h)
            out = out + jnp.einsum('bntc,cd->bntd', h, r(wm[s]))
        return out + bm

    y = (cgp(r(_normalize_adj(adj)), wm1, bm1)
         + cgp(r(_normalize_adj(adj.T)), wm2, bm2))                   # (B,N,t,C)
    y = jnp.pad(y, ((0, 0), (0, 0), (T - t_out, 0), (0, 0)))
    return jnp.transpose(y, (0, 3, 1, 2))


# ----------------------------------------------------------------------------
# Deterministic synthetic parameters in PyTorch shapes, packed for the kernels.
# ----------------------------------------------------------------------------
def init_params(key, hidden, num_steps):
    cb = hidden // len(KERNEL_SET)
    n_mix = (num_steps + 1) * hidden
    ks = iter(jax.random.split(key, 32))

    def inception_params():
        w_all = jnp.zeros((MAX_K, hidden, hidden), jnp.float32)
        b_all = jnp.zeros((1, hidden), jnp.float32)
        for i, kern in enumerate(KERNEL_SET):
            # torch Conv2d(hidden, cb, (1, kern)): weight (cb, hidden, 1, kern)
            w = jax.random.normal(next(ks), (cb, hidden, kern),
                                  jnp.float32) / jnp.sqrt(hidden * kern)
            b = jax.random.normal(next(ks), (cb,), jnp.float32) * 0.05
            # tap p of a kernel-k branch sits at absolute tap offset m = (7-k)+p
            w_packed = jnp.transpose(w, (2, 1, 0))           # (kern, Cin, cb)
            w_all = w_all.at[MAX_K - kern:, :, i * cb:(i + 1) * cb].set(w_packed)
            b_all = b_all.at[0, i * cb:(i + 1) * cb].set(b)
        return w_all, b_all

    def cgp_mlp_params():
        # torch Conv2d((num_steps+1)*hidden, hidden, (1,1)): weight (hidden, n_mix)
        w = jax.random.normal(next(ks), (hidden, n_mix),
                              jnp.float32) / jnp.sqrt(n_mix)
        b = jax.random.normal(next(ks), (hidden,), jnp.float32) * 0.05
        wm = jnp.transpose(w.reshape(hidden, num_steps + 1, hidden), (1, 2, 0))
        return wm, b.reshape(1, hidden)

    wf, bf = inception_params()
    wg, bg = inception_params()
    wm1, bm1 = cgp_mlp_params()
    wm2, bm2 = cgp_mlp_params()
    return wf, bf, wg, bg, wm1, bm1, wm2, bm2


# ----------------------------------------------------------------------------
if __name__ == "__main__":
    B, C, N = 2, 32, 8            # batch, hidden_dim, num_nodes
    receptive_field = 16
    T_in = 19                     # input longer than receptive field (sliced)
    time_, step_size, alpha = 1.0, 0.5, 1.0
    dilation_now = 1              # self.new_dilation at construction time
    num_steps = round(time_ / step_size)
    # TODO(synk): forward's Python-side state mutation (new_dilation *=
    # dilation_factor, intermediate_seq_len = x.size(3)) is host-side config
    # bookkeeping, not tensor compute; it is not part of the kernels.

    key = jax.random.PRNGKey(0)
    kx, ka, kp = jax.random.split(key, 3)
    x = jax.random.normal(kx, (B, C, N, T_in), jnp.float32)          # NCHW
    adj = jax.nn.relu(jax.random.normal(ka, (N, N), jnp.float32))    # adjacency
    params = init_params(kp, C, num_steps)

    out = stblock_forward(None, x, adj, params,
                          receptive_field=receptive_field,
                          dilation=dilation_now, time=time_,
                          step_size=step_size, alpha=alpha)
    out = jax.block_until_ready(out)
    assert out.shape == (B, C, N, receptive_field), out.shape

    ref = stblock_reference(None, x, adj, params,
                            receptive_field=receptive_field,
                            dilation=dilation_now, time=time_,
                            step_size=step_size, alpha=alpha)
    ref = jax.block_until_ready(ref)
    err = float(jnp.max(jnp.abs(out - ref)))
    assert bool(jnp.allclose(out, ref, rtol=3e-2, atol=3e-2)), err

    print("KERNEL_OK")
</pallas_src>

<mosaic_0001>
module attributes {stable_mosaic.version = 11 : i64} {
  func.func @gate_mix_kernel(%arg0: i32, %arg1: memref<80x224xbf16, #tpu.memory_space<vmem>>, %arg2: memref<224x64xbf16, #tpu.memory_space<vmem>>, %arg3: memref<1x64xf32, #tpu.memory_space<vmem>>, %arg4: memref<32x160xbf16, #tpu.memory_space<vmem>>, %arg5: memref<80x160xf32, #tpu.memory_space<vmem>>) attributes {dimension_semantics = [#tpu.dimension_semantics<parallel>], iteration_bounds = array<i64: 2>, scalar_prefetch = 0 : i64, scratch_operands = 0 : i64, tpu.core_type = #tpu.core_type<tc>, window_params = [{transform_indices = @transform_0, window_bounds = array<i64: 80, 224>}, {pipeline_mode = #tpu.pipeline_mode<synchronous>, transform_indices = @transform_1, window_bounds = array<i64: 224, 64>}, {pipeline_mode = #tpu.pipeline_mode<synchronous>, transform_indices = @transform_2, window_bounds = array<i64: 1, 64>}, {pipeline_mode = #tpu.pipeline_mode<synchronous>, transform_indices = @transform_3, window_bounds = array<i64: 32, 160>}, {transform_indices = @transform_4, window_bounds = array<i64: 80, 160>}]} {
    %c0 = arith.constant 0 : index
    %c0_0 = arith.constant 0 : index
    %0 = vector.load %arg1[%c0, %c0_0] : memref<80x224xbf16, #tpu.memory_space<vmem>>, vector<80x224xbf16>
    %c0_1 = arith.constant 0 : index
    %c0_2 = arith.constant 0 : index
    %1 = vector.load %arg2[%c0_1, %c0_2] : memref<224x64xbf16, #tpu.memory_space<vmem>>, vector<224x64xbf16>
    %cst = arith.constant dense<0.000000e+00> : vector<80x64xf32>
    %2 = tpu.matmul %0, %1, %cst {dimension_numbers = #tpu.dot_dimension_numbers<[1], [0], [0], [1], [0, 0, 1, 1], [], []>} : vector<80x224xbf16>, vector<224x64xbf16>, vector<80x64xf32> -> vector<80x64xf32>
    %c0_3 = arith.constant 0 : index
    %c0_4 = arith.constant 0 : index
    %3 = vector.load %arg3[%c0_3, %c0_4] : memref<1x64xf32, #tpu.memory_space<vmem>>, vector<1x64xf32>
    %4 = vector.broadcast %3 : vector<1x64xf32> to vector<80x64xf32>
    %5 = arith.addf %2, %4 : vector<80x64xf32>
    %6 = vector.extract_strided_slice %5 {offsets = [0, 0], sizes = [80, 32], strides = [1, 1]} : vector<80x64xf32> to vector<80x32xf32>
    %7 = math.tanh %6 : vector<80x32xf32>
    %8 = vector.extract_strided_slice %5 {offsets = [0, 32], sizes = [80, 32], strides = [1, 1]} : vector<80x64xf32> to vector<80x32xf32>
    %9 = arith.negf %8 : vector<80x32xf32>
    %10 = math.exp %9 : vector<80x32xf32>
    %cst_5 = arith.constant 1.000000e+00 : f32
    %11 = vector.broadcast %cst_5 : f32 to vector<80x32xf32>
    %12 = arith.addf %11, %10 : vector<80x32xf32>
    %13 = arith.divf %11, %12 : vector<80x32xf32>
    %14 = arith.mulf %7, %13 : vector<80x32xf32>
    %15 = arith.truncf %14 : vector<80x32xf32> to vector<80x32xbf16>
    %c0_6 = arith.constant 0 : index
    %c0_7 = arith.constant 0 : index
    %16 = vector.load %arg4[%c0_6, %c0_7] : memref<32x160xbf16, #tpu.memory_space<vmem>>, vector<32x160xbf16>
    %cst_8 = arith.constant dense<0.000000e+00> : vector<80x160xf32>
    %17 = tpu.matmul %15, %16, %cst_8 {dimension_numbers = #tpu.dot_dimension_numbers<[1], [0], [0], [1], [0, 0, 1, 1], [], []>} : vector<80x32xbf16>, vector<32x160xbf16>, vector<80x160xf32> -> vector<80x160xf32>
    %c0_9 = arith.constant 0 : index
    %c0_10 = arith.constant 0 : index
    %18 = vector.load %arg5[%c0_9, %c0_10] : memref<80x160xf32, #tpu.memory_space<vmem>>, vector<80x160xf32>
    tpu.vector_store %arg5[%c0_9, %c0_10], %17 {strides = array<i32>} : memref<80x160xf32, #tpu.memory_space<vmem>>, vector<80x160xf32>,
    return
  }
  func.func @transform_0(%arg0: i32) -> (i32, i32) {
    %c0_i32 = arith.constant 0 : i32
    %c0_i32_0 = arith.constant 0 : i32
    return %arg0, %c0_i32 : i32, i32
  }
  func.func @transform_1(%arg0: i32) -> (i32, i32) {
    %c0_i32 = arith.constant 0 : i32
    %c0_i32_0 = arith.constant 0 : i32
    %c0_i32_1 = arith.constant 0 : i32
    return %c0_i32, %c0_i32_0 : i32, i32
  }
  func.func @transform_2(%arg0: i32) -> (i32, i32) {
    %c0_i32 = arith.constant 0 : i32
    %c0_i32_0 = arith.constant 0 : i32
    %c0_i32_1 = arith.constant 0 : i32
    return %c0_i32, %c0_i32_0 : i32, i32
  }
  func.func @transform_3(%arg0: i32) -> (i32, i32) {
    %c0_i32 = arith.constant 0 : i32
    %c0_i32_0 = arith.constant 0 : i32
    %c0_i32_1 = arith.constant 0 : i32
    return %c0_i32, %c0_i32_0 : i32, i32
  }
  func.func @transform_4(%arg0: i32) -> (i32, i32) {
    %c0_i32 = arith.constant 0 : i32
    %c0_i32_0 = arith.constant 0 : i32
    return %arg0, %c0_i32 : i32, i32
  }
}

</mosaic_0001>

<llo_original>
// kernel: tpu_custom_call.1
$region0: #{tpu_custom_call.1}
  #allocation0 [shape = 'u32[]', space=smem, size = 0x4, offset = 0x4, fixed_abs, tag = 'smem constant byte address 0x4 - core index']
  #allocation1 [shape = 'u32[144,128]{1,0:T(1,128)}', space=vmem, size = 0x12000, scoped, tag = 'internal scratch']
  %s0 = inlined_call_operand.vmem [shape: bf16[160,224], index: 0, kind: input, shape index: {}]
  %s1 = inlined_call_operand.vmem [shape: bf16[224,64], index: 1, kind: input, shape index: {}]
  %s2 = inlined_call_operand.vmem [shape: f32[1,64], index: 2, kind: input, shape index: {}]
  %s3 = inlined_call_operand.hbm [shape: bf16[32,160], index: 3, kind: input, shape index: {}]
  %s4 = inlined_call_operand.hbm [shape: f32[160,160], index: 4, kind: output, shape index: {}]
  %s5 = sld [smem:[#allocation0]]
  $region53: #{tpu_custom_call.1} parent=0
    _
  %s7 = ssub.s32 1, %s5
  %s8 = scalar_select 0, %s7, %s5
  $region1: #{tpu_custom_call.1} parent=0
    #allocation2 [shape = 'u8[16384]{0}', space=vmem, size = 0x4000, scoped, tag = 'input window, operand 3, single buffered']
    #allocation3 [shape = 's32[2]{0}', space=sflag, size = 0x8, scoped, tag = 'scoped memory for tpu_custom_call.1']
    #allocation4 [shape = 's32[2]{0}', space=sflag, size = 0x8, scoped, tag = 'scoped memory for tpu_custom_call.1']
    #allocation5 [shape = 'u8[163840]{0}', space=vmem, size = 0x28000, scoped, tag = 'output window, operand 0']
    %9 = vsyncpa [#allocation3], 0
    %10 = vsyncpa [#allocation4], 0
    %s11 = scalar_lea.sflag [#allocation4], 1
    %12 = vsyncpa %s11, 0
    loop: start=0, step=1, limit=4
    $region2: #{tpu_custom_call.1} parent=1 // loop_pre_header
      _
    $region3: #{tpu_custom_call.1} parent=1 // loop_header
      %s14 = sphi 0, %s18
      %p15 = scmp.ge.s32.totalorder %s14, 4
      %s24 = sphi 0, %s26
      %s27 = sphi 0, %s24
      %s28 = sphi 0, %s27
      %s44 = sphi 0, %s28
      %s48 = sphi 0, %s48
      %s50 = sphi 0, %s48
      %s51 = sphi 0, %s50
      %s65 = sphi 0, %s51
      %s69 = sphi 0, %s69
      %s71 = sphi 0, %s69
      %s72 = sphi 0, %s71
      %s86 = sphi 0, %s72
      %s90 = sphi 0, %s90
      %s92 = sphi 0, %s90
      %s93 = sphi 0, %s92
      %s107 = sphi 0, %s93
      %s113 = sphi 0, %s115
      %s116 = sphi 0, %s113
      %s117 = sphi 0, %s116
      %s133 = sphi 0, %s117
    $region4: #{tpu_custom_call.1} parent=1 // loop_header_branch
      %17 = sbr.rel (%p15) target = $region8
    $region5: #{tpu_custom_call.1} parent=1 // loop_body
      %s19 = ssub.s32 %s14, 1
      %s20 = ssub.s32 %s14, 2
      %s21 = sadd.s32 %s14, 1
      %s22 = ssub.s32 %s14, %s21
      %p23 = scmp.eq.s32.totalorder %s22, 0
      %s25 = sadd.s32 %s24, 1
      %s26 = scalar_select %p23, %s24, %s25
      %p29 = pneg %p23
      %p30 = scmp.eq.s32.totalorder %s14, 1
      %p31 = por %p29, %p30
      %p32 = scmp.ne.s32.totalorder %s24, %s27
      %p33 = scmp.eq.s32.totalorder %s14, 0
      %p34 = por %p32, %p33
      %p35 = scmp.ne.s32.totalorder %s24, %s27
      %p36 = scmp.eq.s32.totalorder %s19, 1
      %p37 = por %p35, %p36
      %p38 = scmp.ne.s32.totalorder %s27, %s28
      %p39 = scmp.eq.s32.totalorder %s19, 0
      %p40 = por %p38, %p39
      %p41 = scmp.ne.s32.totalorder %s27, %s28
      %p42 = scmp.eq.s32.totalorder %s20, 1
      %p43 = por %p41, %p42
      %p45 = scmp.ne.s32.totalorder %s28, %s44
      %p46 = scmp.eq.s32.totalorder %s20, 0
      %p47 = por %p45, %p46
      %s49 = sadd.s32 %s48, 1
      %p52 = scmp.eq.s32.totalorder %s14, 1
      %p53 = scmp.ne.s32.totalorder %s48, %s50
      %p54 = scmp.eq.s32.totalorder %s14, 0
      %p55 = por %p53, %p54
      %p56 = scmp.ne.s32.totalorder %s48, %s50
      %p57 = scmp.eq.s32.totalorder %s19, 1
      %p58 = por %p56, %p57
      %p59 = scmp.ne.s32.totalorder %s50, %s51
      %p60 = scmp.eq.s32.totalorder %s19, 0
      %p61 = por %p59, %p60
      %p62 = scmp.ne.s32.totalorder %s50, %s51
      %p63 = scmp.eq.s32.totalorder %s20, 1
      %p64 = por %p62, %p63
      %p66 = scmp.ne.s32.totalorder %s51, %s65
      %p67 = scmp.eq.s32.totalorder %s20, 0
      %p68 = por %p66, %p67
      %s70 = sadd.s32 %s69, 1
      %p73 = scmp.eq.s32.totalorder %s14, 1
      %p74 = scmp.ne.s32.totalorder %s69, %s71
      %p75 = scmp.eq.s32.totalorder %s14, 0
      %p76 = por %p74, %p75
      %p77 = scmp.ne.s32.totalorder %s69, %s71
      %p78 = scmp.eq.s32.totalorder %s19, 1
      %p79 = por %p77, %p78
      %p80 = scmp.ne.s32.totalorder %s71, %s72
      %p81 = scmp.eq.s32.totalorder %s19, 0
      %p82 = por %p80, %p81
      %p83 = scmp.ne.s32.totalorder %s71, %s72
      %p84 = scmp.eq.s32.totalorder %s20, 1
      %p85 = por %p83, %p84
      %p87 = scmp.ne.s32.totalorder %s72, %s86
      %p88 = scmp.eq.s32.totalorder %s20, 0
      %p89 = por %p87, %p88
      %s91 = sadd.s32 %s90, 1
      %p94 = scmp.eq.s32.totalorder %s14, 1
      %p95 = scmp.ne.s32.totalorder %s90, %s92
      %p96 = scmp.eq.s32.totalorder %s14, 0
      %p97 = por %p95, %p96
      %p98 = scmp.ne.s32.totalorder %s90, %s92
      %p99 = scmp.eq.s32.totalorder %s19, 1
      %p100 = por %p98, %p99
      %p101 = scmp.ne.s32.totalorder %s92, %s93
      %p102 = scmp.eq.s32.totalorder %s19, 0
      %p103 = por %p101, %p102
      %p104 = scmp.ne.s32.totalorder %s92, %s93
      %p105 = scmp.eq.s32.totalorder %s20, 1
      %p106 = por %p104, %p105
      %p108 = scmp.ne.s32.totalorder %s93, %s107
      %p109 = scmp.eq.s32.totalorder %s20, 0
      %p110 = por %p108, %p109
      %s111 = ssub.s32 %s14, %s21
      %p112 = scmp.eq.s32.totalorder %s111, 0
      %s114 = sadd.s32 %s113, 1
      %s115 = scalar_select %p112, %s113, %s114
      %p118 = pneg %p112
      %p119 = scmp.eq.s32.totalorder %s14, 1
      %p120 = por %p118, %p119
      %p121 = scmp.ne.s32.totalorder %s113, %s116
      %p122 = scmp.eq.s32.totalorder %s14, 0
      %p123 = por %p121, %p122
      %p124 = scmp.ne.s32.totalorder %s113, %s116
      %p125 = scmp.eq.s32.totalorder %s19, 1
      %p126 = por %p124, %p125
      %p127 = scmp.ne.s32.totalorder %s116, %s117
      %p128 = scmp.eq.s32.totalorder %s19, 0
      %p129 = por %p127, %p128
      %p130 = scmp.ne.s32.totalorder %s116, %s117
      %p131 = scmp.eq.s32.totalorder %s20, 1
      %p132 = por %p130, %p131
      %p134 = scmp.ne.s32.totalorder %s117, %s133
      %p135 = scmp.eq.s32.totalorder %s20, 0
      %p136 = por %p134, %p135
      %p137 = scmp.le.s32.totalorder 1, %s14
      %p138 = scmp.lt.s32.totalorder %s14, 3
      %p139 = pnand %p137, %p138
      %p140 = pneg %p139
      // Predicated region
      $region9: #{tpu_custom_call.1} parent=5 // pred_check
        _
      $region10: #{tpu_custom_call.1} parent=5 // pred_check_branch
        %142 = sbr.rel (%p139) target = $region12
      $region11: #{tpu_custom_call.1} parent=5 // pred_region
        %s143 = ssub.s32 %s14, 1
        // Predicated region
        $region13: #{tpu_custom_call.1} parent=11 // pred_check
          %p144 = pneg %p61
        $region14: #{tpu_custom_call.1} parent=11 // pred_check_branch
          %146 = sbr.rel (%p144) target = $region16
        $region15: #{tpu_custom_call.1} parent=11 // pred_region
          _
        $region16: #{tpu_custom_call.1} parent=11 // pred_fallthru
          _
        // Predicated region
        $region17: #{tpu_custom_call.1} parent=11 // pred_check
          %p147 = pneg %p82
        $region18: #{tpu_custom_call.1} parent=11 // pred_check_branch
          %149 = sbr.rel (%p147) target = $region20
        $region19: #{tpu_custom_call.1} parent=11 // pred_region
          _
        $region20: #{tpu_custom_call.1} parent=11 // pred_fallthru
          _
        // Predicated region
        $region21: #{tpu_custom_call.1} parent=11 // pred_check
          %p150 = pneg %p103
        $region22: #{tpu_custom_call.1} parent=11 // pred_check_branch
          %152 = sbr.rel (%p150) target = $region24
        $region23: #{tpu_custom_call.1} parent=11 // pred_region
          %s154 = ssub.s32 512, 512
          %155 = vsyncadd [#allocation3], %s154
          %s156 = sshll.u32 [#allocation2], 4
          %s157 = int_to_ptr.vmem [resolvable:$true] %s156
          %162 = dma.hbm_to_vmem [thread:$0]  %s3, 512, %s157, [#allocation3], 128, 128, 8
        $region24: #{tpu_custom_call.1} parent=11 // pred_fallthru
          _
      $region12: #{tpu_custom_call.1} parent=5 // pred_fallthru
        _
      %p163 = scmp.lt.s32.totalorder %s14, 2
      // Predicated region
      $region25: #{tpu_custom_call.1} parent=5 // pred_check
        %p164 = pneg %p163
      $region26: #{tpu_custom_call.1} parent=5 // pred_check_branch
        %166 = sbr.rel (%p164) target = $region28
      $region27: #{tpu_custom_call.1} parent=5 // pred_region
        // Predicated region
        $region29: #{tpu_custom_call.1} parent=27 // pred_check
          %p167 = pneg %p34
        $region30: #{tpu_custom_call.1} parent=27 // pred_check_branch
          %169 = sbr.rel (%p167) target = $region32
        $region31: #{tpu_custom_call.1} parent=27 // pred_region
          %s170 = smul.u32 10, %s14
          %p171 = scmp.lt.s32.totalorder %s170, 19
          %s172 = scalar_select %p171, %s170, 19
          %s173 = smul.addr %s172, 2
          %s174 = smul.addr %s173, 4
          %s175 = scalar_lea.vmem %s0, %s174
          %s176 = smul.u32 10, %s14
        $region32: #{tpu_custom_call.1} parent=27 // pred_fallthru
          _
      $region28: #{tpu_custom_call.1} parent=5 // pred_fallthru
        _
      %p177 = scmp.le.s32.totalorder 1, %s14
      %p178 = scmp.lt.s32.totalorder %s14, 3
      %p179 = pnand %p177, %p178
      %p180 = pneg %p179
      // Predicated region
      $region33: #{tpu_custom_call.1} parent=5 // pred_check
        _
      $region34: #{tpu_custom_call.1} parent=5 // pred_check_branch
        %182 = sbr.rel (%p179) target = $region36
      $region35: #{tpu_custom_call.1} parent=5 // pred_region
        %s183 = ssub.s32 %s14, 1
        // Predicated region
        $region37: #{tpu_custom_call.1} parent=35 // pred_check
          %p184 = pneg %p103
        $region38: #{tpu_custom_call.1} parent=35 // pred_check_branch
          %186 = sbr.rel (%p184) target = $region40
        $region39: #{tpu_custom_call.1} parent=35 // pred_region
          %187 = dma.done [#allocation3], 512
        $region40: #{tpu_custom_call.1} parent=35 // pred_fallthru
          _
        %s188 = smul.u32 10, %s19
        %p189 = scmp.lt.s32.totalorder %s188, 19
        %s190 = scalar_select %p189, %s188, 19
        %s191 = smul.addr %s190, 2
        %s192 = smul.addr %s191, 4
        %s193 = scalar_lea.vmem %s0, %s192
        %p194 = pneg %p40
        %p195 = pneg %p37
        %p196 = pneg %p61
        %p197 = pneg %p58
        %p198 = pneg %p82
        %p199 = pneg %p79
        %p200 = pneg %p103
        %p201 = pneg %p100
        %p202 = pneg %p129
        %p203 = pneg %p126
        %s204 = sand.u32 %s116, 1
        %s205 = scalar_lea.sflag [#allocation4], %s204
        %s206 = sand.u32 %s116, 1
        %s207 = smul.addr %s206, 160
        %s208 = scalar_lea.vmem [#allocation5], %s207
        %s209 = smul.u32 10, %s19
        %p210 = scmp.lt.s32.totalorder %s209, 19
        %s211 = scalar_select %p210, %s209, 19
        %s212 = smul.addr %s211, 2
        %s213 = smul.addr %s212, 4
        %s214 = scalar_lea.vmem %s0, %s213
        %s215 = smul.u32 10, %s19
        %s216 = smul.u32 10, %s19
        %v218 = vld [vmem:[%s214] sm:$0xff]
        %v219 = vld [vmem:[%s214 + $0x8] sm:$0xff]
        %v220 = vld [vmem:[%s214 + $0x10] sm:$0xff]
        %v221 = vld [vmem:[%s214 + $0x18] sm:$0xff]
        %v222 = vld [vmem:[%s214 + $0x20] sm:$0xff]
        %v223 = vld [vmem:[%s214 + $0x28] sm:$0xff]
        %v224 = vld [vmem:[%s214 + $0x30] sm:$0xff]
        %v225 = vld [vmem:[%s214 + $0x38] sm:$0xff]
        %v226 = vld [vmem:[%s214 + $0x40] sm:$0xff]
        %v227 = vld [vmem:[%s214 + $0x48] sm:$0xff]
        %v228 = vld [vmem:[%s1] sm:$0xf]
        %v229 = vld [vmem:[%s1 + $0x4] sm:$0xf]
        %v230 = vld [vmem:[%s1 + $0x8] sm:$0xf]
        %v231 = vld [vmem:[%s1 + $0xc] sm:$0xf]
        %v232 = vld [vmem:[%s1 + $0x10] sm:$0xf]
        %v233 = vld [vmem:[%s1 + $0x14] sm:$0xf]
        %v234 = vld [vmem:[%s1 + $0x18] sm:$0xf]
        %v235 = vld [vmem:[%s1 + $0x1c] sm:$0xf]
        %v236 = vld [vmem:[%s1 + $0x20] sm:$0xf]
        %v237 = vld [vmem:[%s1 + $0x24] sm:$0xf]
        %v238 = vld [vmem:[%s1 + $0x28] sm:$0xf]
        %v239 = vld [vmem:[%s1 + $0x2c] sm:$0xf]
        %v240 = vld [vmem:[%s1 + $0x30] sm:$0xf]
        %v241 = vld [vmem:[%s1 + $0x34] sm:$0xf]
        %v242 = vld [vmem:[%s1 + $0x38] sm:$0xf]
        %v243 = vld [vmem:[%s1 + $0x3c] sm:$0xf]
        %v244 = vld [vmem:[%s1 + $0x40] sm:$0xf]
        %v245 = vld [vmem:[%s1 + $0x44] sm:$0xf]
        %v246 = vld [vmem:[%s1 + $0x48] sm:$0xf]
        %v247 = vld [vmem:[%s1 + $0x4c] sm:$0xf]
        %v248 = vld [vmem:[%s1 + $0x50] sm:$0xf]
        %v249 = vld [vmem:[%s1 + $0x54] sm:$0xf]
        %v250 = vld [vmem:[%s1 + $0x58] sm:$0xf]
        %v251 = vld [vmem:[%s1 + $0x5c] sm:$0xf]
        %v252 = vld [vmem:[%s1 + $0x60] sm:$0xf]
        %v253 = vld [vmem:[%s1 + $0x64] sm:$0xf]
        %v254 = vld [vmem:[%s1 + $0x68] sm:$0xf]
        %v255 = vld [vmem:[%s1 + $0x6c] sm:$0xf]
        %v256 = vld [vmem:[%s2] sm:$0x1]
        %v258 = vlaneseq
        %v259 = vshrl.u32 %v258, 7
        %v260 = vsub.s32 0, %v259
        %v261 = vrot.slane %v256, %v260
        %v273 = vunpack.c.l.b16 %v218
        %v274 = vunpack.c.h.b16 %v218
        %v275 = vunpack.c.l.b16 %v219
        %v276 = vunpack.c.h.b16 %v219
        %v277 = vunpack.c.l.b16 %v220
        %v278 = vunpack.c.h.b16 %v220
        %v279 = vunpack.c.l.b16 %v221
        %v280 = vunpack.c.h.b16 %v221
        %v281 = vunpack.c.l.b16 %v222
        %v282 = vunpack.c.h.b16 %v222
        %v283 = vunpack.c.l.b16 %v223
        %v284 = vunpack.c.h.b16 %v223
        %v285 = vunpack.c.l.b16 %v224
        %v286 = vunpack.c.h.b16 %v224
        %v287 = vunpack.c.l.b16 %v225
        %v288 = vunpack.c.h.b16 %v225
        %v289 = vunpack.c.l.b16 %v226
        %v290 = vunpack.c.h.b16 %v226
        %v291 = vunpack.c.l.b16 %v227
        %v292 = vunpack.c.h.b16 %v227
        %v293 = vpack.c.b16 %v275, %v273
        %v294 = vpack.c.b16 %v276, %v274
        %v295 = vpack.c.b16 %v279, %v277
        %v296 = vpack.c.b16 %v280, %v278
        %v297 = vpack.c.b16 %v283, %v281
        %v298 = vpack.c.b16 %v284, %v282
        %v299 = vpack.c.b16 %v287, %v285
        %v300 = vpack.c.b16 %v288, %v286
        %v301 = vpack.c.b16 %v291, %v289
        %v302 = vpack.c.b16 %v292, %v290
        %v336 = vunpack.c.l.b16 %v228
        %v337 = vunpack.c.l.b16 %v229
        %v338 = vunpack.c.l.b16 %v230
        %v339 = vunpack.c.l.b16 %v231
        %v340 = vunpack.c.l.b16 %v232
        %v341 = vunpack.c.l.b16 %v233
        %v342 = vunpack.c.l.b16 %v234
        %v343 = vunpack.c.l.b16 %v235
        %v344 = vunpack.c.l.b16 %v236
        %v345 = vunpack.c.l.b16 %v237
        %v346 = vunpack.c.l.b16 %v238
        %v347 = vunpack.c.l.b16 %v239
        %v348 = vunpack.c.l.b16 %v240
        %v349 = vunpack.c.l.b16 %v241
        %v350 = vunpack.c.l.b16 %v242
        %v351 = vunpack.c.l.b16 %v243
        %v352 = vunpack.c.l.b16 %v244
        %v353 = vunpack.c.l.b16 %v245
        %v354 = vunpack.c.l.b16 %v246
        %v355 = vunpack.c.l.b16 %v247
        %v356 = vunpack.c.l.b16 %v248
        %v357 = vunpack.c.l.b16 %v249
        %v358 = vunpack.c.l.b16 %v250
        %v359 = vunpack.c.l.b16 %v251
        %v360 = vunpack.c.l.b16 %v252
        %v361 = vunpack.c.l.b16 %v253
        %v362 = vunpack.c.l.b16 %v254
        %v363 = vunpack.c.l.b16 %v255
        %v364 = vpack.c.b16 %v337, %v336
        %v365 = vpack.c.b16 %v339, %v338
        %v366 = vpack.c.b16 %v341, %v340
        %v367 = vpack.c.b16 %v343, %v342
        %v368 = vpack.c.b16 %v345, %v344
        %v369 = vpack.c.b16 %v347, %v346
        %v370 = vpack.c.b16 %v349, %v348
        %v371 = vpack.c.b16 %v351, %v350
        %v372 = vpack.c.b16 %v353, %v352
        %v373 = vpack.c.b16 %v355, %v354
        %v374 = vpack.c.b16 %v357, %v356
        %v375 = vpack.c.b16 %v359, %v358
        %v376 = vpack.c.b16 %v361, %v360
        %v377 = vpack.c.b16 %v363, %v362
        %vm392 = vcmask 785408
        %v394 = vsel %vm392, %v294, 0
        %v397 = vsel %vm392, %v296, 0
        %v400 = vsel %vm392, %v298, 0
        %v403 = vsel %vm392, %v300, 0
        %v406 = vsel %vm392, %v302, 0
        %408 = vmatprep.subr.bf16.mxu0 0
        %409 = vmatpush1.bf16.msra.mxu0 %v364
        %410 = vmatprep.subr.bf16.mxu0 0
        %411 = vmatpush1.bf16.msra.mxu0 %v365
        %412 = vmatprep.subr.bf16.mxu0 0
        %413 = vmatpush1.bf16.msra.mxu0 %v366
        %414 = vmatprep.subr.bf16.mxu0 0
        %415 = vmatpush1.bf16.msra.mxu0 %v367
        %416 = vmatprep.subr.bf16.mxu0 0
        %417 = vmatpush1.bf16.msra.mxu0 %v368
        %418 = vmatprep.subr.bf16.mxu0 0
        %419 = vmatpush1.bf16.msra.mxu0 %v369
        %420 = vmatprep.subr.bf16.mxu0 0
        %421 = vmatpush1.bf16.msra.mxu0 %v370
        %422 = vmatprep.subr.bf16.mxu0 0
        %423 = vmatpush1.bf16.msra.mxu0 %v371
        %424 = vmatprep.subr.bf16.mxu0 0
        %425 = vmatpush1.bf16.msra.mxu0 %v372
        %426 = vmatprep.subr.bf16.mxu0 0
        %427 = vmatpush1.bf16.msra.mxu0 %v373
        %428 = vmatprep.subr.bf16.mxu0 0
        %429 = vmatpush1.bf16.msra.mxu0 %v374
        %430 = vmatprep.subr.bf16.mxu0 0
        %431 = vmatpush1.bf16.msra.mxu0 %v375
        %432 = vmatprep.subr.bf16.mxu0 0
        %433 = vmatpush1.bf16.msra.mxu0 %v376
        %434 = vmatprep.subr.bf16.mxu0 0
        %435 = vmatpush1.bf16.msra.mxu0 %v377
        %436 = vmatprep.subr.bf16.mxu0 0
        %437 = vmatpush1.bf16.msra.mxu0 0
        %438 = vmatprep.subr.bf16.mxu0 0
        %439 = vmatpush1.bf16.msra.mxu0 0
        %440 = vmatprep.mubr.bf16.mxu0 %v394
        %441 = vmatmul.mubr.bf16.gmra.mrb[0].mxu0 %v293
        %v442 = vpop.f32.mrb[0].mxu0
        %v443 = vadd.f32 %v261, %v442
        %v444 = vpop.f32.mrb[0].mxu0
        %v445 = vpop.f32.mrb[0].mxu0
        %v446 = vadd.f32 %v261, %v445
        %v447 = vpop.f32.mrb[0].mxu0
        %448 = vmatprep.mubr.bf16.mxu0 %v397
        %449 = vmatmul.mubr.bf16.gmra.mrb[0].mxu0 %v295
        %v450 = vpop.f32.mrb[0].mxu0
        %v451 = vadd.f32 %v261, %v450
        %v452 = vpop.f32.mrb[0].mxu0
        %v453 = vpop.f32.mrb[0].mxu0
        %v454 = vadd.f32 %v261, %v453
        %v455 = vpop.f32.mrb[0].mxu0
        %456 = vmatprep.mubr.bf16.mxu0 %v400
        %457 = vmatmul.mubr.bf16.gmra.mrb[0].mxu0 %v297
        %v458 = vpop.f32.mrb[0].mxu0
        %v459 = vadd.f32 %v261, %v458
        %v460 = vpop.f32.mrb[0].mxu0
        %v461 = vpop.f32.mrb[0].mxu0
        %v462 = vadd.f32 %v261, %v461
        %v463 = vpop.f32.mrb[0].mxu0
        %464 = vmatprep.mubr.bf16.mxu0 %v403
        %465 = vmatmul.mubr.bf16.gmra.mrb[0].mxu0 %v299
        %v466 = vpop.f32.mrb[0].mxu0
        %v467 = vadd.f32 %v261, %v466
        %v468 = vpop.f32.mrb[0].mxu0
        %v469 = vpop.f32.mrb[0].mxu0
        %v470 = vadd.f32 %v261, %v469
        %v471 = vpop.f32.mrb[0].mxu0
        %472 = vmatprep.mubr.bf16.mxu0 %v406
        %473 = vmatmul.mubr.bf16.gmra.mrb[0].mxu0 %v301
        %v474 = vpop.f32.mrb[0].mxu0
        %v475 = vadd.f32 %v261, %v474
        %v476 = vpop.f32.mrb[0].mxu0
        %v477 = vpop.f32.mrb[0].mxu0
        %v478 = vadd.f32 %v261, %v477
        %v479 = vpop.f32.mrb[0].mxu0
        %480 = vdwg.mxu0
        %v481 = vtanh.pop %v443
        %v482 = vtanh.pop %v446
        %v483 = vtanh.pop %v451
        %v484 = vtanh.pop %v454
        %v485 = vtanh.pop %v459
        %v486 = vtanh.pop %v462
        %v487 = vtanh.pop %v467
        %v488 = vtanh.pop %v470
        %v489 = vtanh.pop %v475
        %v490 = vtanh.pop %v478
        %v491 = vxor.u32 %v443, 2147483648
        %v492 = vxor.u32 %v446, 2147483648
        %v493 = vxor.u32 %v451, 2147483648
        %v494 = vxor.u32 %v454, 2147483648
        %v495 = vxor.u32 %v459, 2147483648
        %v496 = vxor.u32 %v462, 2147483648
        %v497 = vxor.u32 %v467, 2147483648
        %v498 = vxor.u32 %v470, 2147483648
        %v499 = vxor.u32 %v475, 2147483648
        %v500 = vxor.u32 %v478, 2147483648
        %v501 = vmul.f32 %v491, 1.442695
        %v502 = vpow.pop %v501
        %v503 = vmul.f32 %v492, 1.442695
        %v504 = vpow.pop %v503
        %v505 = vmul.f32 %v493, 1.442695
        %v506 = vpow.pop %v505
        %v507 = vmul.f32 %v494, 1.442695
        %v508 = vpow.pop %v507
        %v509 = vmul.f32 %v495, 1.442695
        %v510 = vpow.pop %v509
        %v511 = vmul.f32 %v496, 1.442695
        %v512 = vpow.pop %v511
        %v513 = vmul.f32 %v497, 1.442695
        %v514 = vpow.pop %v513
        %v515 = vmul.f32 %v498, 1.442695
        %v516 = vpow.pop %v515
        %v517 = vmul.f32 %v499, 1.442695
        %v518 = vpow.pop %v517
        %v519 = vmul.f32 %v500, 1.442695
        %v520 = vpow.pop %v519
        %v521 = vadd.f32 %v502, 1.0
        %v522 = vadd.f32 %v504, 1.0
        %v523 = vadd.f32 %v506, 1.0
        %v524 = vadd.f32 %v508, 1.0
        %v525 = vadd.f32 %v510, 1.0
        %v526 = vadd.f32 %v512, 1.0
        %v527 = vadd.f32 %v514, 1.0
        %v528 = vadd.f32 %v516, 1.0
        %v529 = vadd.f32 %v518, 1.0
        %v530 = vadd.f32 %v520, 1.0
        %v531 = vrcp.pop %v521
        %v532 = vmul.f32 1.0, %v531
        %v533 = vrcp.pop %v522
        %v534 = vmul.f32 1.0, %v533
        %v535 = vrcp.pop %v523
        %v536 = vmul.f32 1.0, %v535
        %v537 = vrcp.pop %v524
        %v538 = vmul.f32 1.0, %v537
        %v539 = vrcp.pop %v525
        %v540 = vmul.f32 1.0, %v539
        %v541 = vrcp.pop %v526
        %v542 = vmul.f32 1.0, %v541
        %v543 = vrcp.pop %v527
        %v544 = vmul.f32 1.0, %v543
        %v545 = vrcp.pop %v528
        %v546 = vmul.f32 1.0, %v545
        %v547 = vrcp.pop %v529
        %v548 = vmul.f32 1.0, %v547
        %v549 = vrcp.pop %v530
        %v550 = vmul.f32 1.0, %v549
        %561 = vrot.lane.b32.xlu0 %v532, 96
        %v562 = vpop.permute.xlu0 %561
        %563 = vrot.lane.b32.xlu0 %v534, 96
        %v564 = vpop.permute.xlu0 %563
        %565 = vrot.lane.b32.xlu0 %v536, 96
        %v566 = vpop.permute.xlu0 %565
        %567 = vrot.lane.b32.xlu0 %v538, 96
        %v568 = vpop.permute.xlu0 %567
        %569 = vrot.lane.b32.xlu0 %v540, 96
        %v570 = vpop.permute.xlu0 %569
        %571 = vrot.lane.b32.xlu0 %v542, 96
        %v572 = vpop.permute.xlu0 %571
        %573 = vrot.lane.b32.xlu0 %v544, 96
        %v574 = vpop.permute.xlu0 %573
        %575 = vrot.lane.b32.xlu0 %v546, 96
        %v576 = vpop.permute.xlu0 %575
        %577 = vrot.lane.b32.xlu0 %v548, 96
        %v578 = vpop.permute.xlu0 %577
        %579 = vrot.lane.b32.xlu0 %v550, 96
        %v580 = vpop.permute.xlu0 %579
        %v591 = vmul.f32 %v481, %v562
        %v592 = vmul.f32 %v482, %v564
        %v593 = vmul.f32 %v483, %v566
        %v594 = vmul.f32 %v484, %v568
        %v595 = vmul.f32 %v485, %v570
        %v596 = vmul.f32 %v486, %v572
        %v597 = vmul.f32 %v487, %v574
        %v598 = vmul.f32 %v488, %v576
        %v599 = vmul.f32 %v489, %v578
        %v600 = vmul.f32 %v490, %v580
        %v601 = vpack.c.bf16 %v592, %v591
        %v602 = vpack.c.bf16 %v594, %v593
        %v603 = vpack.c.bf16 %v596, %v595
        %v604 = vpack.c.bf16 %v598, %v597
        %v605 = vpack.c.bf16 %v600, %v599
        %v606 = vld [vmem:[#allocation2] sm:$0xff]
        %v607 = vld [vmem:[#allocation2 + $0x8] sm:$0xff]
        %v608 = vld [vmem:[#allocation2 + $0x10] sm:$0xff]
        %v609 = vld [vmem:[#allocation2 + $0x18] sm:$0xff]
        %v614 = vunpack.c.l.b16 %v606
        %v615 = vunpack.c.h.b16 %v606
        %v616 = vunpack.c.l.b16 %v607
        %v617 = vunpack.c.h.b16 %v607
        %v618 = vunpack.c.l.b16 %v608
        %v619 = vunpack.c.h.b16 %v608
        %v620 = vunpack.c.l.b16 %v609
        %v621 = vunpack.c.h.b16 %v609
        %v622 = vpack.c.b16 %v616, %v614
        %v623 = vpack.c.b16 %v617, %v615
        %v624 = vpack.c.b16 %v620, %v618
        %v625 = vpack.c.b16 %v621, %v619
        %vm630 = vcmask 261120
        %v632 = vsel %vm630, %v601, 0
        %v635 = vsel %vm630, %v602, 0
        %v638 = vsel %vm630, %v603, 0
        %v641 = vsel %vm630, %v604, 0
        %v644 = vsel %vm630, %v605, 0
        %646 = vmatprep.subr.bf16.mxu0 %v623
        %647 = vmatpush1.bf16.msra.mxu0 %v622
        %648 = vmatprep.subr.bf16.mxu0 %v625
        %649 = vmatpush1.bf16.msra.mxu0 %v624
        %650 = vmatprep.subr.bf16.mxu0 0
        %651 = vmatpush1.bf16.msra.mxu0 0
        %652 = vmatprep.subr.bf16.mxu0 0
        %653 = vmatpush1.bf16.msra.mxu0 0
        %654 = vmatprep.subr.bf16.mxu0 0
        %655 = vmatpush1.bf16.msra.mxu0 0
        %656 = vmatprep.subr.bf16.mxu0 0
        %657 = vmatpush1.bf16.msra.mxu0 0
        %658 = vmatprep.subr.bf16.mxu0 0
        %659 = vmatpush1.bf16.msra.mxu0 0
        %660 = vmatprep.subr.bf16.mxu0 0
        %661 = vmatpush1.bf16.msra.mxu0 0
        %662 = vmatprep.subr.bf16.mxu0 0
        %663 = vmatpush1.bf16.msra.mxu0 0
        %664 = vmatprep.subr.bf16.mxu0 0
        %665 = vmatpush1.bf16.msra.mxu0 0
        %666 = vmatprep.subr.bf16.mxu0 0
        %667 = vmatpush1.bf16.msra.mxu0 0
        %668 = vmatprep.subr.bf16.mxu0 0
        %669 = vmatpush1.bf16.msra.mxu0 0
        %670 = vmatprep.subr.bf16.mxu0 0
        %671 = vmatpush1.bf16.msra.mxu0 0
        %672 = vmatprep.subr.bf16.mxu0 0
        %673 = vmatpush1.bf16.msra.mxu0 0
        %674 = vmatprep.subr.bf16.mxu0 0
        %675 = vmatpush1.bf16.msra.mxu0 0
        %676 = vmatprep.subr.bf16.mxu0 0
        %677 = vmatpush1.bf16.msra.mxu0 0
        %678 = vmatprep.mubr.bf16.mxu0 0
        %679 = vmatmul.mubr.bf16.gmra.mrb[0].mxu0 %v632
        %v680 = vpop.f32.mrb[0].mxu0
        %v681 = vadd.f32 0.0, %v680
        %v682 = vpop.f32.mrb[0].mxu0
        %v683 = vadd.f32 0.0, %v682
        %v684 = vpop.f32.mrb[0].mxu0
        %v685 = vadd.f32 0.0, %v684
        %v686 = vpop.f32.mrb[0].mxu0
        %v687 = vadd.f32 0.0, %v686
        %688 = vmatprep.mubr.bf16.mxu0 0
        %689 = vmatmul.mubr.bf16.gmra.mrb[0].mxu0 %v635
        %v690 = vpop.f32.mrb[0].mxu0
        %v691 = vadd.f32 0.0, %v690
        %v692 = vpop.f32.mrb[0].mxu0
        %v693 = vadd.f32 0.0, %v692
        %v694 = vpop.f32.mrb[0].mxu0
        %v695 = vadd.f32 0.0, %v694
        %v696 = vpop.f32.mrb[0].mxu0
        %v697 = vadd.f32 0.0, %v696
        %698 = vmatprep.mubr.bf16.mxu0 0
        %699 = vmatmul.mubr.bf16.gmra.mrb[0].mxu0 %v638
        %v700 = vpop.f32.mrb[0].mxu0
        %v701 = vadd.f32 0.0, %v700
        %v702 = vpop.f32.mrb[0].mxu0
        %v703 = vadd.f32 0.0, %v702
        %v704 = vpop.f32.mrb[0].mxu0
        %v705 = vadd.f32 0.0, %v704
        %v706 = vpop.f32.mrb[0].mxu0
        %v707 = vadd.f32 0.0, %v706
        %708 = vmatprep.mubr.bf16.mxu0 0
        %709 = vmatmul.mubr.bf16.gmra.mrb[0].mxu0 %v641
        %v710 = vpop.f32.mrb[0].mxu0
        %v711 = vadd.f32 0.0, %v710
        %v712 = vpop.f32.mrb[0].mxu0
        %v713 = vadd.f32 0.0, %v712
        %v714 = vpop.f32.mrb[0].mxu0
        %v715 = vadd.f32 0.0, %v714
        %v716 = vpop.f32.mrb[0].mxu0
        %v717 = vadd.f32 0.0, %v716
        %718 = vmatprep.mubr.bf16.mxu0 0
        %719 = vmatmul.mubr.bf16.gmra.mrb[0].mxu0 %v644
        %v720 = vpop.f32.mrb[0].mxu0
        %v721 = vadd.f32 0.0, %v720
        %v722 = vpop.f32.mrb[0].mxu0
        %v723 = vadd.f32 0.0, %v722
        %v724 = vpop.f32.mrb[0].mxu0
        %v725 = vadd.f32 0.0, %v724
        %v726 = vpop.f32.mrb[0].mxu0
        %v727 = vadd.f32 0.0, %v726
        %728 = vdwg.mxu0
        %729 = vst [vmem:[%s208] sm:$0xff] %v681
        %730 = vst.msk [vmem:[%s208 + $0x8] sm:$0xff] %vm630, %v683
        %731 = vst [vmem:[%s208 + $0x10] sm:$0xff] %v685
        %732 = vst.msk [vmem:[%s208 + $0x18] sm:$0xff] %vm630, %v687
        %733 = vst [vmem:[%s208 + $0x20] sm:$0xff] %v691
        %734 = vst.msk [vmem:[%s208 + $0x28] sm:$0xff] %vm630, %v693
        %735 = vst [vmem:[%s208 + $0x30] sm:$0xff] %v695
        %736 = vst.msk [vmem:[%s208 + $0x38] sm:$0xff] %vm630, %v697
        %737 = vst [vmem:[%s208 + $0x40] sm:$0xff] %v701
        %738 = vst.msk [vmem:[%s208 + $0x48] sm:$0xff] %vm630, %v703
        %739 = vst [vmem:[%s208 + $0x50] sm:$0xff] %v705
        %740 = vst.msk [vmem:[%s208 + $0x58] sm:$0xff] %vm630, %v707
        %741 = vst [vmem:[%s208 + $0x60] sm:$0xff] %v711
        %742 = vst.msk [vmem:[%s208 + $0x68] sm:$0xff] %vm630, %v713
        %743 = vst [vmem:[%s208 + $0x70] sm:$0xff] %v715
        %744 = vst.msk [vmem:[%s208 + $0x78] sm:$0xff] %vm630, %v717
        %745 = vst [vmem:[%s208 + $0x80] sm:$0xff] %v721
        %746 = vst.msk [vmem:[%s208 + $0x88] sm:$0xff] %vm630, %v723
        %747 = vst [vmem:[%s208 + $0x90] sm:$0xff] %v725
        %748 = vst.msk [vmem:[%s208 + $0x98] sm:$0xff] %vm630, %v727
        %s749 = sand.u32 %s116, 1
        %s750 = scalar_lea.sflag [#allocation4], %s749
        %s751 = sand.u32 %s116, 1
        %s752 = smul.addr %s751, 160
        %s753 = scalar_lea.vmem [#allocation5], %s752
        // Predicated region
        $region41: #{tpu_custom_call.1} parent=35 // pred_check
          %p754 = pneg %p126
        $region42: #{tpu_custom_call.1} parent=35 // pred_check_branch
          %756 = sbr.rel (%p754) target = $region44
        $region43: #{tpu_custom_call.1} parent=35 // pred_region
          %s757 = smul.u32 10, %s19
          %s759 = ssub.s32 2560, 2560
          %760 = vsyncadd %s750, %s759
          %s761 = smul.addr %s757, 2
          %s762 = smul.addr %s761, 128
          %s763 = scalar_lea.hbm %s4, %s762
          %s764 = sshll.u32 %s753, 4
          %s765 = int_to_ptr.vmem [resolvable:$true] %s764
          %770 = dma.vmem_to_hbm [thread:$0]  %s765, 2560, %s763, %s750, 256, 256, 16
        $region44: #{tpu_custom_call.1} parent=35 // pred_fallthru
          _
      $region36: #{tpu_custom_call.1} parent=5 // pred_fallthru
        _
      %p771 = scmp.le.s32.totalorder 2, %s14
      // Predicated region
      $region45: #{tpu_custom_call.1} parent=5 // pred_check
        %p772 = pneg %p771
      $region46: #{tpu_custom_call.1} parent=5 // pred_check_branch
        %774 = sbr.rel (%p772) target = $region48
      $region47: #{tpu_custom_call.1} parent=5 // pred_region
        %s775 = ssub.s32 %s14, 2
        // Predicated region
        $region49: #{tpu_custom_call.1} parent=47 // pred_check
          %p776 = pneg %p132
        $region50: #{tpu_custom_call.1} parent=47 // pred_check_branch
          %778 = sbr.rel (%p776) target = $region52
        $region51: #{tpu_custom_call.1} parent=47 // pred_region
          %s779 = sand.u32 %s117, 1
          %s780 = scalar_lea.sflag [#allocation4], %s779
          %s781 = sand.u32 %s117, 1
          %s782 = smul.addr %s781, 160
          %s783 = scalar_lea.vmem [#allocation5], %s782
          %784 = dma.done %s780, 2560
        $region52: #{tpu_custom_call.1} parent=47 // pred_fallthru
          _
      $region48: #{tpu_custom_call.1} parent=5 // pred_fallthru
        _
    $region6: #{tpu_custom_call.1} parent=1 // loop_footer
      %s18 = sadd.s32 1, %s14
    $region7: #{tpu_custom_call.1} parent=1 // loop_footer_branch
      %13 = sbr.rel target = $region3
    $region8: #{tpu_custom_call.1} parent=1 // loop_exit
      _
    %785 = vsyncpa [#allocation3], 1
    %s786 = scalar_lea.sflag [#allocation3], 1
    %787 = vsyncpa %s786, 1
    %788 = vsyncpa [#allocation4], 1
    %s789 = scalar_lea.sflag [#allocation4], 1
    %790 = vsyncpa %s789, 1

</llo_original>
